<compile_context>
chip_gen: v7x
topology: tpu7x:2x2x1
jax: 0.10.0
libtpu: 0.0.40
codegen_flags: <defaults>
</compile_context>

<pallas_src>
import functools
import math

import jax
import jax.numpy as jnp
import numpy as np
from jax import lax
from jax.experimental import pallas as pl
from jax.experimental.pallas import tpu as pltpu


def _resblock_kernel(xp_ref, w1_ref, b1_ref, w2_ref, b2_ref, out_ref, hpad_ref,
                     *, H, W, C, res_scale):
    """Full ResBlock for one image (grid axis = batch).

    xp_ref  : (1, H+2, W*C)  vertically zero-padded NHWC input, (w,c) flattened on lanes
    w{1,2}  : (3, W*C, W*C)  banded per-dy weights (dx folded into the band)
    b{1,2}  : (1, W*C)       bias tiled over W
    out_ref : (1, H, W*C)
    hpad_ref: (H+2, W*C) f32 scratch: vertically padded conv1 activation
    """
    WC = W * C

    def conv3x3(row_block, w_ref):
        acc = jnp.dot(row_block(0), w_ref[0], preferred_element_type=jnp.float32)
        for dy in (1, 2):
            acc = acc + jnp.dot(row_block(dy), w_ref[dy],
                                preferred_element_type=jnp.float32)
        return acc

    # ---- conv1 + bias + ReLU ----
    h = conv3x3(lambda dy: xp_ref[0, dy:dy + H, :].astype(jnp.float32), w1_ref)
    h = jnp.maximum(h + b1_ref[...], 0.0)

    # ---- stage conv1 output with vertical zero border (lane offset 0) ----
    zero_row = jnp.zeros((1, WC), jnp.float32)
    hpad_ref[0:1, :] = zero_row
    hpad_ref[H + 1:H + 2, :] = zero_row
    hpad_ref[1:H + 1, :] = h

    # ---- conv2 + bias ----
    y = conv3x3(lambda dy: hpad_ref[dy:dy + H, :], w2_ref) + b2_ref[...]

    # ---- residual: (optionally) scale, then add x ----
    if res_scale != 1.0:              # static Python check: no VPU mul when scale == 1
        y = y * res_scale
    x_center = xp_ref[0, 1:H + 1, :].astype(jnp.float32)
    out_ref[0] = (y + x_center).astype(out_ref.dtype)


def _banded_weights(w_oihw, W, C):
    """(Cout, Cin, 3, 3) OIHW kernel -> (3, W*Cin, W*Cout) banded per-dy matrices.

    B[dy, w_in*C + ci, w_out*C + co] = w[co, ci, dy, dx] with dx = w_in - w_out + 1,
    zero outside the band (which also implements the horizontal zero padding).
    """
    sel = np.zeros((3, W, W), np.float32)
    for dx in range(3):
        for w_out in range(W):
            w_in = w_out + dx - 1
            if 0 <= w_in < W:
                sel[dx, w_in, w_out] = 1.0
    sel = jnp.asarray(sel, w_oihw.dtype)
    w_k = jnp.transpose(w_oihw, (2, 3, 1, 0))            # (dy, dx, Cin, Cout)
    banded = jnp.einsum('xab,dxio->daibo', sel, w_k)      # (dy, W_in, Cin, W_out, Cout)
    return banded.reshape(3, W * C, W * C)


def resblock_pallas(x_nchw, w1, b1, w2, b2, *, res_scale=1.0):
    """x_nchw: (N, C, H, W); w*: (Cout, Cin, 3, 3) (PyTorch OIHW); b*: (C,)."""
    N, C, H, W = x_nchw.shape
    WC = W * C

    # --- glue: NCHW -> NHWC, vertical zero pad only, flatten (W, C) into lanes ---
    x_nhwc = jnp.transpose(x_nchw, (0, 2, 3, 1))
    xvp = jnp.pad(x_nhwc, ((0, 0), (1, 1), (0, 0), (0, 0)))
    xvp2 = xvp.reshape(N, H + 2, WC)

    w1b = _banded_weights(w1, W, C)
    w2b = _banded_weights(w2, W, C)
    b1t = jnp.tile(b1, W)[None, :]
    b2t = jnp.tile(b2, W)[None, :]

    kernel = functools.partial(_resblock_kernel, H=H, W=W, C=C,
                               res_scale=float(res_scale))

    # VMEM budget: double-buffered activation blocks + resident weights/bias + scratch.
    f32 = 4
    block_bytes = f32 * 2 * ((H + 2) * WC + H * WC)
    const_bytes = f32 * 2 * (2 * 3 * WC * WC + 2 * WC)
    scratch_bytes = f32 * (H + 2) * WC
    vmem_limit = int(min(max(4 * (block_bytes + const_bytes + scratch_bytes),
                             8 * 2**20), 64 * 2**20))

    out2 = pl.pallas_call(
        kernel,
        out_shape=jax.ShapeDtypeStruct((N, H, WC), x_nchw.dtype),
        grid_spec=pltpu.PrefetchScalarGridSpec(
            num_scalar_prefetch=0,
            grid=(N,),
            in_specs=[
                pl.BlockSpec((1, H + 2, WC), lambda n: (n, 0, 0)),
                pl.BlockSpec((3, WC, WC), lambda n: (0, 0, 0)),   # constant index_map:
                pl.BlockSpec((1, WC), lambda n: (0, 0)),          # fetched once, resident
                pl.BlockSpec((3, WC, WC), lambda n: (0, 0, 0)),
                pl.BlockSpec((1, WC), lambda n: (0, 0)),
            ],
            out_specs=pl.BlockSpec((1, H, WC), lambda n: (n, 0, 0)),
            scratch_shapes=[pltpu.VMEM((H + 2, WC), jnp.float32)],
        ),
        compiler_params=pltpu.CompilerParams(
            dimension_semantics=("parallel",),
            vmem_limit_bytes=vmem_limit,
        ),
    )(xvp2, w1b, b1t, w2b, b2t)

    # --- glue: (N, H, W*C) -> (N, H, W, C) -> NCHW ---
    return out2.reshape(N, H, W, C).transpose(0, 3, 1, 2)


def resblock_ref(x, w1, b1, w2, b2, res_scale=1.0):
    """Pure-JAX reference mirroring the PyTorch forward (NCHW)."""
    dn = ('NCHW', 'OIHW', 'NCHW')

    def conv(a, w):
        return lax.conv_general_dilated(a, w, window_strides=(1, 1),
                                        padding=((1, 1), (1, 1)),
                                        dimension_numbers=dn,
                                        precision=lax.Precision.HIGHEST)

    y = conv(x, w1) + b1[None, :, None, None]
    y = jnp.maximum(y, 0.0)
    y = conv(y, w2) + b2[None, :, None, None]
    return y * res_scale + x


if __name__ == "__main__":
    key = jax.random.PRNGKey(0)
    N, C, H, W = 2, 4, 16, 16          # n_feats = 4, kernel_size = 3, padding = 1

    k0, k1, k2, k3, k4 = jax.random.split(key, 5)
    x = jax.random.normal(k0, (N, C, H, W), jnp.float32)

    # Deterministic Conv2d-style init (uniform in +/- 1/sqrt(fan_in)).
    bound = 1.0 / math.sqrt(C * 3 * 3)
    w1 = jax.random.uniform(k1, (C, C, 3, 3), jnp.float32, -bound, bound)
    b1 = jax.random.uniform(k2, (C,), jnp.float32, -bound, bound)
    w2 = jax.random.uniform(k3, (C, C, 3, 3), jnp.float32, -bound, bound)
    b2 = jax.random.uniform(k4, (C,), jnp.float32, -bound, bound)

    # res_scale = 1.0 (module default; scale multiply statically skipped)
    out = jax.block_until_ready(resblock_pallas(x, w1, b1, w2, b2, res_scale=1.0))
    ref = resblock_ref(x, w1, b1, w2, b2, 1.0)
    assert out.shape == x.shape and out.dtype == x.dtype
    np.testing.assert_allclose(np.asarray(out), np.asarray(ref), rtol=1e-3, atol=1e-3)

    # also exercise the res_scale != 1 path
    out_s = jax.block_until_ready(resblock_pallas(x, w1, b1, w2, b2, res_scale=0.5))
    ref_s = resblock_ref(x, w1, b1, w2, b2, 0.5)
    np.testing.assert_allclose(np.asarray(out_s), np.asarray(ref_s), rtol=1e-3, atol=1e-3)

    print("KERNEL_OK")
</pallas_src>

<mosaic_0001>
module attributes {stable_mosaic.version = 11 : i64} {
  func.func @_resblock_kernel(%arg0: i32, %arg1: memref<1x18x64xf32, #tpu.memory_space<vmem>>, %arg2: memref<3x64x64xf32, #tpu.memory_space<vmem>>, %arg3: memref<1x64xf32, #tpu.memory_space<vmem>>, %arg4: memref<3x64x64xf32, #tpu.memory_space<vmem>>, %arg5: memref<1x64xf32, #tpu.memory_space<vmem>>, %arg6: memref<1x16x64xf32, #tpu.memory_space<vmem>>, %arg7: memref<18x64xf32, #tpu.memory_space<vmem>>) attributes {dimension_semantics = [#tpu.dimension_semantics<parallel>], iteration_bounds = array<i64: 2>, scalar_prefetch = 0 : i64, scratch_operands = 1 : i64, tpu.core_type = #tpu.core_type<tc>, window_params = [{transform_indices = @transform_0, window_bounds = array<i64: 1, 18, 64>}, {pipeline_mode = #tpu.pipeline_mode<synchronous>, transform_indices = @transform_1, window_bounds = array<i64: 3, 64, 64>}, {pipeline_mode = #tpu.pipeline_mode<synchronous>, transform_indices = @transform_2, window_bounds = array<i64: 1, 64>}, {pipeline_mode = #tpu.pipeline_mode<synchronous>, transform_indices = @transform_3, window_bounds = array<i64: 3, 64, 64>}, {pipeline_mode = #tpu.pipeline_mode<synchronous>, transform_indices = @transform_4, window_bounds = array<i64: 1, 64>}, {transform_indices = @transform_5, window_bounds = array<i64: 1, 16, 64>}]} {
    %c0 = arith.constant 0 : index
    %c0_0 = arith.constant 0 : index
    %c0_1 = arith.constant 0 : index
    %0 = vector.load %arg1[%c0, %c0_0, %c0_1] : memref<1x18x64xf32, #tpu.memory_space<vmem>>, vector<1x16x64xf32>
    %1 = vector.shape_cast %0 : vector<1x16x64xf32> to vector<16x64xf32>
    %c0_2 = arith.constant 0 : index
    %c0_3 = arith.constant 0 : index
    %c0_4 = arith.constant 0 : index
    %2 = vector.load %arg2[%c0_2, %c0_3, %c0_4] : memref<3x64x64xf32, #tpu.memory_space<vmem>>, vector<1x64x64xf32>
    %3 = vector.shape_cast %2 : vector<1x64x64xf32> to vector<64x64xf32>
    %cst = arith.constant dense<0.000000e+00> : vector<16x64xf32>
    %4 = tpu.matmul %1, %3, %cst {dimension_numbers = #tpu.dot_dimension_numbers<[1], [0], [0], [1], [0, 0, 1, 1], [], []>} : vector<16x64xf32>, vector<64x64xf32>, vector<16x64xf32> -> vector<16x64xf32>
    %c0_5 = arith.constant 0 : index
    %c1 = arith.constant 1 : index
    %c0_6 = arith.constant 0 : index
    %5 = vector.load %arg1[%c0_5, %c1, %c0_6] : memref<1x18x64xf32, #tpu.memory_space<vmem>>, vector<1x16x64xf32>
    %6 = vector.shape_cast %5 : vector<1x16x64xf32> to vector<16x64xf32>
    %c1_7 = arith.constant 1 : index
    %c0_8 = arith.constant 0 : index
    %c0_9 = arith.constant 0 : index
    %7 = vector.load %arg2[%c1_7, %c0_8, %c0_9] : memref<3x64x64xf32, #tpu.memory_space<vmem>>, vector<1x64x64xf32>
    %8 = vector.shape_cast %7 : vector<1x64x64xf32> to vector<64x64xf32>
    %cst_10 = arith.constant dense<0.000000e+00> : vector<16x64xf32>
    %9 = tpu.matmul %6, %8, %cst_10 {dimension_numbers = #tpu.dot_dimension_numbers<[1], [0], [0], [1], [0, 0, 1, 1], [], []>} : vector<16x64xf32>, vector<64x64xf32>, vector<16x64xf32> -> vector<16x64xf32>
    %10 = arith.addf %4, %9 : vector<16x64xf32>
    %c0_11 = arith.constant 0 : index
    %c2 = arith.constant 2 : index
    %c0_12 = arith.constant 0 : index
    %11 = vector.load %arg1[%c0_11, %c2, %c0_12] : memref<1x18x64xf32, #tpu.memory_space<vmem>>, vector<1x16x64xf32>
    %12 = vector.shape_cast %11 : vector<1x16x64xf32> to vector<16x64xf32>
    %c2_13 = arith.constant 2 : index
    %c0_14 = arith.constant 0 : index
    %c0_15 = arith.constant 0 : index
    %13 = vector.load %arg2[%c2_13, %c0_14, %c0_15] : memref<3x64x64xf32, #tpu.memory_space<vmem>>, vector<1x64x64xf32>
    %14 = vector.shape_cast %13 : vector<1x64x64xf32> to vector<64x64xf32>
    %cst_16 = arith.constant dense<0.000000e+00> : vector<16x64xf32>
    %15 = tpu.matmul %12, %14, %cst_16 {dimension_numbers = #tpu.dot_dimension_numbers<[1], [0], [0], [1], [0, 0, 1, 1], [], []>} : vector<16x64xf32>, vector<64x64xf32>, vector<16x64xf32> -> vector<16x64xf32>
    %16 = arith.addf %10, %15 : vector<16x64xf32>
    %c0_17 = arith.constant 0 : index
    %c0_18 = arith.constant 0 : index
    %17 = vector.load %arg3[%c0_17, %c0_18] : memref<1x64xf32, #tpu.memory_space<vmem>>, vector<1x64xf32>
    %18 = vector.broadcast %17 : vector<1x64xf32> to vector<16x64xf32>
    %19 = arith.addf %16, %18 : vector<16x64xf32>
    %cst_19 = arith.constant 0.000000e+00 : f32
    %20 = vector.broadcast %cst_19 : f32 to vector<16x64xf32>
    %21 = arith.maximumf %19, %20 : vector<16x64xf32>
    %cst_20 = arith.constant 0.000000e+00 : f32
    %22 = vector.broadcast %cst_20 : f32 to vector<1x64xf32>
    %c0_21 = arith.constant 0 : index
    %c0_22 = arith.constant 0 : index
    %23 = vector.load %arg7[%c0_21, %c0_22] : memref<18x64xf32, #tpu.memory_space<vmem>>, vector<1x64xf32>
    tpu.vector_store %arg7[%c0_21, %c0_22], %22 {strides = array<i32>} : memref<18x64xf32, #tpu.memory_space<vmem>>, vector<1x64xf32>,
    %c17 = arith.constant 17 : index
    %c0_23 = arith.constant 0 : index
    %24 = vector.load %arg7[%c17, %c0_23] : memref<18x64xf32, #tpu.memory_space<vmem>>, vector<1x64xf32>
    tpu.vector_store %arg7[%c17, %c0_23], %22 {strides = array<i32>} : memref<18x64xf32, #tpu.memory_space<vmem>>, vector<1x64xf32>,
    %c1_24 = arith.constant 1 : index
    %c0_25 = arith.constant 0 : index
    %25 = vector.load %arg7[%c1_24, %c0_25] : memref<18x64xf32, #tpu.memory_space<vmem>>, vector<16x64xf32>
    tpu.vector_store %arg7[%c1_24, %c0_25], %21 {strides = array<i32>} : memref<18x64xf32, #tpu.memory_space<vmem>>, vector<16x64xf32>,
    %c0_26 = arith.constant 0 : index
    %c0_27 = arith.constant 0 : index
    %26 = vector.load %arg7[%c0_26, %c0_27] : memref<18x64xf32, #tpu.memory_space<vmem>>, vector<16x64xf32>
    %c0_28 = arith.constant 0 : index
    %c0_29 = arith.constant 0 : index
    %c0_30 = arith.constant 0 : index
    %27 = vector.load %arg4[%c0_28, %c0_29, %c0_30] : memref<3x64x64xf32, #tpu.memory_space<vmem>>, vector<1x64x64xf32>
    %28 = vector.shape_cast %27 : vector<1x64x64xf32> to vector<64x64xf32>
    %cst_31 = arith.constant dense<0.000000e+00> : vector<16x64xf32>
    %29 = tpu.matmul %26, %28, %cst_31 {dimension_numbers = #tpu.dot_dimension_numbers<[1], [0], [0], [1], [0, 0, 1, 1], [], []>} : vector<16x64xf32>, vector<64x64xf32>, vector<16x64xf32> -> vector<16x64xf32>
    %c1_32 = arith.constant 1 : index
    %c0_33 = arith.constant 0 : index
    %30 = vector.load %arg7[%c1_32, %c0_33] : memref<18x64xf32, #tpu.memory_space<vmem>>, vector<16x64xf32>
    %c1_34 = arith.constant 1 : index
    %c0_35 = arith.constant 0 : index
    %c0_36 = arith.constant 0 : index
    %31 = vector.load %arg4[%c1_34, %c0_35, %c0_36] : memref<3x64x64xf32, #tpu.memory_space<vmem>>, vector<1x64x64xf32>
    %32 = vector.shape_cast %31 : vector<1x64x64xf32> to vector<64x64xf32>
    %cst_37 = arith.constant dense<0.000000e+00> : vector<16x64xf32>
    %33 = tpu.matmul %30, %32, %cst_37 {dimension_numbers = #tpu.dot_dimension_numbers<[1], [0], [0], [1], [0, 0, 1, 1], [], []>} : vector<16x64xf32>, vector<64x64xf32>, vector<16x64xf32> -> vector<16x64xf32>
    %34 = arith.addf %29, %33 : vector<16x64xf32>
    %c2_38 = arith.constant 2 : index
    %c0_39 = arith.constant 0 : index
    %35 = vector.load %arg7[%c2_38, %c0_39] : memref<18x64xf32, #tpu.memory_space<vmem>>, vector<16x64xf32>
    %c2_40 = arith.constant 2 : index
    %c0_41 = arith.constant 0 : index
    %c0_42 = arith.constant 0 : index
    %36 = vector.load %arg4[%c2_40, %c0_41, %c0_42] : memref<3x64x64xf32, #tpu.memory_space<vmem>>, vector<1x64x64xf32>
    %37 = vector.shape_cast %36 : vector<1x64x64xf32> to vector<64x64xf32>
    %cst_43 = arith.constant dense<0.000000e+00> : vector<16x64xf32>
    %38 = tpu.matmul %35, %37, %cst_43 {dimension_numbers = #tpu.dot_dimension_numbers<[1], [0], [0], [1], [0, 0, 1, 1], [], []>} : vector<16x64xf32>, vector<64x64xf32>, vector<16x64xf32> -> vector<16x64xf32>
    %39 = arith.addf %34, %38 : vector<16x64xf32>
    %c0_44 = arith.constant 0 : index
    %c0_45 = arith.constant 0 : index
    %40 = vector.load %arg5[%c0_44, %c0_45] : memref<1x64xf32, #tpu.memory_space<vmem>>, vector<1x64xf32>
    %41 = vector.broadcast %40 : vector<1x64xf32> to vector<16x64xf32>
    %42 = arith.addf %39, %41 : vector<16x64xf32>
    %c0_46 = arith.constant 0 : index
    %c1_47 = arith.constant 1 : index
    %c0_48 = arith.constant 0 : index
    %43 = vector.load %arg1[%c0_46, %c1_47, %c0_48] : memref<1x18x64xf32, #tpu.memory_space<vmem>>, vector<1x16x64xf32>
    %44 = vector.shape_cast %43 : vector<1x16x64xf32> to vector<16x64xf32>
    %45 = arith.addf %42, %44 : vector<16x64xf32>
    %c0_49 = arith.constant 0 : index
    %c0_50 = arith.constant 0 : index
    %c0_51 = arith.constant 0 : index
    %46 = vector.load %arg6[%c0_49, %c0_50, %c0_51] : memref<1x16x64xf32, #tpu.memory_space<vmem>>, vector<1x16x64xf32>
    %47 = vector.shape_cast %46 : vector<1x16x64xf32> to vector<16x64xf32>
    %48 = vector.shape_cast %45 : vector<16x64xf32> to vector<1x16x64xf32>
    tpu.vector_store %arg6[%c0_49, %c0_50, %c0_51], %48 {strides = array<i32>} : memref<1x16x64xf32, #tpu.memory_space<vmem>>, vector<1x16x64xf32>,
    return
  }
  func.func @transform_0(%arg0: i32) -> (i32, i32, i32) {
    %c0_i32 = arith.constant 0 : i32
    %c0_i32_0 = arith.constant 0 : i32
    %c0_i32_1 = arith.constant 0 : i32
    return %arg0, %c0_i32, %c0_i32_0 : i32, i32, i32
  }
  func.func @transform_1(%arg0: i32) -> (i32, i32, i32) {
    %c0_i32 = arith.constant 0 : i32
    %c0_i32_0 = arith.constant 0 : i32
    %c0_i32_1 = arith.constant 0 : i32
    %c0_i32_2 = arith.constant 0 : i32
    return %c0_i32, %c0_i32_0, %c0_i32_1 : i32, i32, i32
  }
  func.func @transform_2(%arg0: i32) -> (i32, i32) {
    %c0_i32 = arith.constant 0 : i32
    %c0_i32_0 = arith.constant 0 : i32
    %c0_i32_1 = arith.constant 0 : i32
    return %c0_i32, %c0_i32_0 : i32, i32
  }
  func.func @transform_3(%arg0: i32) -> (i32, i32, i32) {
    %c0_i32 = arith.constant 0 : i32
    %c0_i32_0 = arith.constant 0 : i32
    %c0_i32_1 = arith.constant 0 : i32
    %c0_i32_2 = arith.constant 0 : i32
    return %c0_i32, %c0_i32_0, %c0_i32_1 : i32, i32, i32
  }
  func.func @transform_4(%arg0: i32) -> (i32, i32) {
    %c0_i32 = arith.constant 0 : i32
    %c0_i32_0 = arith.constant 0 : i32
    %c0_i32_1 = arith.constant 0 : i32
    return %c0_i32, %c0_i32_0 : i32, i32
  }
  func.func @transform_5(%arg0: i32) -> (i32, i32, i32) {
    %c0_i32 = arith.constant 0 : i32
    %c0_i32_0 = arith.constant 0 : i32
    %c0_i32_1 = arith.constant 0 : i32
    return %arg0, %c0_i32, %c0_i32_0 : i32, i32, i32
  }
}

</mosaic_0001>

<llo_original>
// kernel: tpu_custom_call.1
$region0: #{tpu_custom_call.1}
  #allocation0 [shape = 'u32[]', space=smem, size = 0x4, offset = 0x4, fixed_abs, tag = 'smem constant byte address 0x4 - core index']
  #allocation1 [shape = 'u32[144,128]{1,0:T(1,128)}', space=vmem, size = 0x12000, scoped, tag = 'internal scratch']
  #allocation2 [shape = 'f32[18,64]{1,0:T(8,128)}', space=vmem, size = 0x3000, scoped, tag = 'scratch operand']
  %s0 = inlined_call_operand.vmem [shape: f32[2,18,64], index: 0, kind: input, shape index: {}]
  %s1 = inlined_call_operand.hbm [shape: f32[3,64,64], index: 1, kind: input, shape index: {}]
  %s2 = inlined_call_operand.vmem [shape: f32[1,64], index: 2, kind: input, shape index: {}]
  %s3 = inlined_call_operand.hbm [shape: f32[3,64,64], index: 3, kind: input, shape index: {}]
  %s4 = inlined_call_operand.vmem [shape: f32[1,64], index: 4, kind: input, shape index: {}]
  %s5 = inlined_call_operand.hbm [shape: f32[2,16,64], index: 5, kind: output, shape index: {}]
  %s6 = sld [smem:[#allocation0]]
  $region61: #{tpu_custom_call.1} parent=0
    _
  %s8 = ssub.s32 1, %s6
  %s9 = scalar_select 0, %s8, %s6
  $region1: #{tpu_custom_call.1} parent=0
    #allocation3 [shape = 'u8[98304]{0}', space=vmem, size = 0x18000, scoped, tag = 'input window, operand 1, single buffered']
    #allocation4 [shape = 's32[2]{0}', space=sflag, size = 0x8, scoped, tag = 'scoped memory for tpu_custom_call.1']
    #allocation5 [shape = 's32[2]{0}', space=sflag, size = 0x8, scoped, tag = 'scoped memory for tpu_custom_call.1']
    #allocation6 [shape = 'u8[98304]{0}', space=vmem, size = 0x18000, scoped, tag = 'input window, operand 3, single buffered']
    #allocation7 [shape = 's32[1]{0}', space=sflag, size = 0x4, scoped, tag = 'scoped memory for tpu_custom_call.1']
    #allocation8 [shape = 'u8[16384]{0}', space=vmem, size = 0x4000, scoped, tag = 'output window, operand 0']
    %10 = vsyncpa [#allocation4], 0
    %11 = vsyncpa [#allocation7], 0
    %12 = vsyncpa [#allocation5], 0
    %s13 = scalar_lea.sflag [#allocation5], 1
    %14 = vsyncpa %s13, 0
    loop: start=0, step=1, limit=4
    $region2: #{tpu_custom_call.1} parent=1 // loop_pre_header
      _
    $region3: #{tpu_custom_call.1} parent=1 // loop_header
      %s16 = sphi 0, %s20
      %p17 = scmp.ge.s32.totalorder %s16, 4
      %s26 = sphi 0, %s28
      %s29 = sphi 0, %s26
      %s30 = sphi 0, %s29
      %s46 = sphi 0, %s30
      %s50 = sphi 0, %s50
      %s52 = sphi 0, %s50
      %s53 = sphi 0, %s52
      %s67 = sphi 0, %s53
      %s71 = sphi 0, %s71
      %s73 = sphi 0, %s71
      %s74 = sphi 0, %s73
      %s88 = sphi 0, %s74
      %s92 = sphi 0, %s92
      %s94 = sphi 0, %s92
      %s95 = sphi 0, %s94
      %s109 = sphi 0, %s95
      %s113 = sphi 0, %s113
      %s115 = sphi 0, %s113
      %s116 = sphi 0, %s115
      %s130 = sphi 0, %s116
      %s136 = sphi 0, %s138
      %s139 = sphi 0, %s136
      %s140 = sphi 0, %s139
      %s156 = sphi 0, %s140
    $region4: #{tpu_custom_call.1} parent=1 // loop_header_branch
      %19 = sbr.rel (%p17) target = $region8
    $region5: #{tpu_custom_call.1} parent=1 // loop_body
      %s21 = ssub.s32 %s16, 1
      %s22 = ssub.s32 %s16, 2
      %s23 = sadd.s32 %s16, 1
      %s24 = ssub.s32 %s16, %s23
      %p25 = scmp.eq.s32.totalorder %s24, 0
      %s27 = sadd.s32 %s26, 1
      %s28 = scalar_select %p25, %s26, %s27
      %p31 = pneg %p25
      %p32 = scmp.eq.s32.totalorder %s16, 1
      %p33 = por %p31, %p32
      %p34 = scmp.ne.s32.totalorder %s26, %s29
      %p35 = scmp.eq.s32.totalorder %s16, 0
      %p36 = por %p34, %p35
      %p37 = scmp.ne.s32.totalorder %s26, %s29
      %p38 = scmp.eq.s32.totalorder %s21, 1
      %p39 = por %p37, %p38
      %p40 = scmp.ne.s32.totalorder %s29, %s30
      %p41 = scmp.eq.s32.totalorder %s21, 0
      %p42 = por %p40, %p41
      %p43 = scmp.ne.s32.totalorder %s29, %s30
      %p44 = scmp.eq.s32.totalorder %s22, 1
      %p45 = por %p43, %p44
      %p47 = scmp.ne.s32.totalorder %s30, %s46
      %p48 = scmp.eq.s32.totalorder %s22, 0
      %p49 = por %p47, %p48
      %s51 = sadd.s32 %s50, 1
      %p54 = scmp.eq.s32.totalorder %s16, 1
      %p55 = scmp.ne.s32.totalorder %s50, %s52
      %p56 = scmp.eq.s32.totalorder %s16, 0
      %p57 = por %p55, %p56
      %p58 = scmp.ne.s32.totalorder %s50, %s52
      %p59 = scmp.eq.s32.totalorder %s21, 1
      %p60 = por %p58, %p59
      %p61 = scmp.ne.s32.totalorder %s52, %s53
      %p62 = scmp.eq.s32.totalorder %s21, 0
      %p63 = por %p61, %p62
      %p64 = scmp.ne.s32.totalorder %s52, %s53
      %p65 = scmp.eq.s32.totalorder %s22, 1
      %p66 = por %p64, %p65
      %p68 = scmp.ne.s32.totalorder %s53, %s67
      %p69 = scmp.eq.s32.totalorder %s22, 0
      %p70 = por %p68, %p69
      %s72 = sadd.s32 %s71, 1
      %p75 = scmp.eq.s32.totalorder %s16, 1
      %p76 = scmp.ne.s32.totalorder %s71, %s73
      %p77 = scmp.eq.s32.totalorder %s16, 0
      %p78 = por %p76, %p77
      %p79 = scmp.ne.s32.totalorder %s71, %s73
      %p80 = scmp.eq.s32.totalorder %s21, 1
      %p81 = por %p79, %p80
      %p82 = scmp.ne.s32.totalorder %s73, %s74
      %p83 = scmp.eq.s32.totalorder %s21, 0
      %p84 = por %p82, %p83
      %p85 = scmp.ne.s32.totalorder %s73, %s74
      %p86 = scmp.eq.s32.totalorder %s22, 1
      %p87 = por %p85, %p86
      %p89 = scmp.ne.s32.totalorder %s74, %s88
      %p90 = scmp.eq.s32.totalorder %s22, 0
      %p91 = por %p89, %p90
      %s93 = sadd.s32 %s92, 1
      %p96 = scmp.eq.s32.totalorder %s16, 1
      %p97 = scmp.ne.s32.totalorder %s92, %s94
      %p98 = scmp.eq.s32.totalorder %s16, 0
      %p99 = por %p97, %p98
      %p100 = scmp.ne.s32.totalorder %s92, %s94
      %p101 = scmp.eq.s32.totalorder %s21, 1
      %p102 = por %p100, %p101
      %p103 = scmp.ne.s32.totalorder %s94, %s95
      %p104 = scmp.eq.s32.totalorder %s21, 0
      %p105 = por %p103, %p104
      %p106 = scmp.ne.s32.totalorder %s94, %s95
      %p107 = scmp.eq.s32.totalorder %s22, 1
      %p108 = por %p106, %p107
      %p110 = scmp.ne.s32.totalorder %s95, %s109
      %p111 = scmp.eq.s32.totalorder %s22, 0
      %p112 = por %p110, %p111
      %s114 = sadd.s32 %s113, 1
      %p117 = scmp.eq.s32.totalorder %s16, 1
      %p118 = scmp.ne.s32.totalorder %s113, %s115
      %p119 = scmp.eq.s32.totalorder %s16, 0
      %p120 = por %p118, %p119
      %p121 = scmp.ne.s32.totalorder %s113, %s115
      %p122 = scmp.eq.s32.totalorder %s21, 1
      %p123 = por %p121, %p122
      %p124 = scmp.ne.s32.totalorder %s115, %s116
      %p125 = scmp.eq.s32.totalorder %s21, 0
      %p126 = por %p124, %p125
      %p127 = scmp.ne.s32.totalorder %s115, %s116
      %p128 = scmp.eq.s32.totalorder %s22, 1
      %p129 = por %p127, %p128
      %p131 = scmp.ne.s32.totalorder %s116, %s130
      %p132 = scmp.eq.s32.totalorder %s22, 0
      %p133 = por %p131, %p132
      %s134 = ssub.s32 %s16, %s23
      %p135 = scmp.eq.s32.totalorder %s134, 0
      %s137 = sadd.s32 %s136, 1
      %s138 = scalar_select %p135, %s136, %s137
      %p141 = pneg %p135
      %p142 = scmp.eq.s32.totalorder %s16, 1
      %p143 = por %p141, %p142
      %p144 = scmp.ne.s32.totalorder %s136, %s139
      %p145 = scmp.eq.s32.totalorder %s16, 0
      %p146 = por %p144, %p145
      %p147 = scmp.ne.s32.totalorder %s136, %s139
      %p148 = scmp.eq.s32.totalorder %s21, 1
      %p149 = por %p147, %p148
      %p150 = scmp.ne.s32.totalorder %s139, %s140
      %p151 = scmp.eq.s32.totalorder %s21, 0
      %p152 = por %p150, %p151
      %p153 = scmp.ne.s32.totalorder %s139, %s140
      %p154 = scmp.eq.s32.totalorder %s22, 1
      %p155 = por %p153, %p154
      %p157 = scmp.ne.s32.totalorder %s140, %s156
      %p158 = scmp.eq.s32.totalorder %s22, 0
      %p159 = por %p157, %p158
      %p160 = scmp.le.s32.totalorder 1, %s16
      %p161 = scmp.lt.s32.totalorder %s16, 3
      %p162 = pnand %p160, %p161
      %p163 = pneg %p162
      // Predicated region
      $region9: #{tpu_custom_call.1} parent=5 // pred_check
        _
      $region10: #{tpu_custom_call.1} parent=5 // pred_check_branch
        %165 = sbr.rel (%p162) target = $region12
      $region11: #{tpu_custom_call.1} parent=5 // pred_region
        %s166 = ssub.s32 %s16, 1
        // Predicated region
        $region13: #{tpu_custom_call.1} parent=11 // pred_check
          %p167 = pneg %p63
        $region14: #{tpu_custom_call.1} parent=11 // pred_check_branch
          %169 = sbr.rel (%p167) target = $region16
        $region15: #{tpu_custom_call.1} parent=11 // pred_region
          %s171 = ssub.s32 3072, 3072
          %172 = vsyncadd [#allocation4], %s171
          %s173 = sshll.u32 [#allocation3], 4
          %s174 = int_to_ptr.vmem [resolvable:$true] %s173
          %179 = dma.hbm_to_vmem [thread:$0]  %s1, 3072, %s174, [#allocation4], 128, 128, 8
        $region16: #{tpu_custom_call.1} parent=11 // pred_fallthru
          _
        // Predicated region
        $region17: #{tpu_custom_call.1} parent=11 // pred_check
          %p180 = pneg %p84
        $region18: #{tpu_custom_call.1} parent=11 // pred_check_branch
          %182 = sbr.rel (%p180) target = $region20
        $region19: #{tpu_custom_call.1} parent=11 // pred_region
          _
        $region20: #{tpu_custom_call.1} parent=11 // pred_fallthru
          _
        // Predicated region
        $region21: #{tpu_custom_call.1} parent=11 // pred_check
          %p183 = pneg %p105
        $region22: #{tpu_custom_call.1} parent=11 // pred_check_branch
          %185 = sbr.rel (%p183) target = $region24
        $region23: #{tpu_custom_call.1} parent=11 // pred_region
          %s187 = ssub.s32 3072, 3072
          %188 = vsyncadd [#allocation7], %s187
          %s189 = sshll.u32 [#allocation6], 4
          %s190 = int_to_ptr.vmem [resolvable:$true] %s189
          %195 = dma.hbm_to_vmem [thread:$0]  %s3, 3072, %s190, [#allocation7], 128, 128, 8
        $region24: #{tpu_custom_call.1} parent=11 // pred_fallthru
          _
        // Predicated region
        $region25: #{tpu_custom_call.1} parent=11 // pred_check
          %p196 = pneg %p126
        $region26: #{tpu_custom_call.1} parent=11 // pred_check_branch
          %198 = sbr.rel (%p196) target = $region28
        $region27: #{tpu_custom_call.1} parent=11 // pred_region
          _
        $region28: #{tpu_custom_call.1} parent=11 // pred_fallthru
          _
      $region12: #{tpu_custom_call.1} parent=5 // pred_fallthru
        _
      %p199 = scmp.lt.s32.totalorder %s16, 2
      // Predicated region
      $region29: #{tpu_custom_call.1} parent=5 // pred_check
        %p200 = pneg %p199
      $region30: #{tpu_custom_call.1} parent=5 // pred_check_branch
        %202 = sbr.rel (%p200) target = $region32
      $region31: #{tpu_custom_call.1} parent=5 // pred_region
        // Predicated region
        $region33: #{tpu_custom_call.1} parent=31 // pred_check
          %p203 = pneg %p36
        $region34: #{tpu_custom_call.1} parent=31 // pred_check_branch
          %205 = sbr.rel (%p203) target = $region36
        $region35: #{tpu_custom_call.1} parent=31 // pred_region
          %p206 = scmp.lt.s32.totalorder %s16, 1
          %s207 = scalar_select %p206, %s16, 1
          %s208 = smul.addr %s207, 3
          %s209 = smul.addr %s208, 8
          %s210 = scalar_lea.vmem %s0, %s209
        $region36: #{tpu_custom_call.1} parent=31 // pred_fallthru
          _
      $region32: #{tpu_custom_call.1} parent=5 // pred_fallthru
        _
      %p211 = scmp.le.s32.totalorder 1, %s16
      %p212 = scmp.lt.s32.totalorder %s16, 3
      %p213 = pnand %p211, %p212
      %p214 = pneg %p213
      // Predicated region
      $region37: #{tpu_custom_call.1} parent=5 // pred_check
        _
      $region38: #{tpu_custom_call.1} parent=5 // pred_check_branch
        %216 = sbr.rel (%p213) target = $region40
      $region39: #{tpu_custom_call.1} parent=5 // pred_region
        %s217 = ssub.s32 %s16, 1
        // Predicated region
        $region41: #{tpu_custom_call.1} parent=39 // pred_check
          %p218 = pneg %p63
        $region42: #{tpu_custom_call.1} parent=39 // pred_check_branch
          %220 = sbr.rel (%p218) target = $region44
        $region43: #{tpu_custom_call.1} parent=39 // pred_region
          %221 = dma.done [#allocation4], 3072
        $region44: #{tpu_custom_call.1} parent=39 // pred_fallthru
          _
        // Predicated region
        $region45: #{tpu_custom_call.1} parent=39 // pred_check
          %p222 = pneg %p105
        $region46: #{tpu_custom_call.1} parent=39 // pred_check_branch
          %224 = sbr.rel (%p222) target = $region48
        $region47: #{tpu_custom_call.1} parent=39 // pred_region
          %225 = dma.done [#allocation7], 3072
        $region48: #{tpu_custom_call.1} parent=39 // pred_fallthru
          _
        %p226 = scmp.lt.s32.totalorder %s21, 1
        %s227 = scalar_select %p226, %s21, 1
        %s228 = smul.addr %s227, 3
        %s229 = smul.addr %s228, 8
        %s230 = scalar_lea.vmem %s0, %s229
        %p231 = pneg %p42
        %p232 = pneg %p39
        %p233 = pneg %p63
        %p234 = pneg %p60
        %p235 = pneg %p84
        %p236 = pneg %p81
        %p237 = pneg %p105
        %p238 = pneg %p102
        %p239 = pneg %p126
        %p240 = pneg %p123
        %p241 = pneg %p152
        %p242 = pneg %p149
        %s243 = sand.u32 %s139, 1
        %s244 = scalar_lea.sflag [#allocation5], %s243
        %s245 = sand.u32 %s139, 1
        %s246 = smul.addr %s245, 16
        %s247 = scalar_lea.vmem [#allocation8], %s246
        %p248 = scmp.lt.s32.totalorder %s21, 1
        %s249 = scalar_select %p248, %s21, 1
        %s250 = smul.addr %s249, 3
        %s251 = smul.addr %s250, 8
        %s252 = scalar_lea.vmem %s0, %s251
        %v253 = vld [vmem:[%s252] sm:$0xff]
        %v254 = vld [vmem:[%s252 + $0x8] sm:$0xff]
        %v255 = vld [vmem:[#allocation3] sm:$0xff]
        %v256 = vld [vmem:[#allocation3 + $0x8] sm:$0xff]
        %v257 = vld [vmem:[#allocation3 + $0x10] sm:$0xff]
        %v258 = vld [vmem:[#allocation3 + $0x18] sm:$0xff]
        %v259 = vld [vmem:[#allocation3 + $0x20] sm:$0xff]
        %v260 = vld [vmem:[#allocation3 + $0x28] sm:$0xff]
        %v261 = vld [vmem:[#allocation3 + $0x30] sm:$0xff]
        %v262 = vld [vmem:[#allocation3 + $0x38] sm:$0xff]
        %v263 = vld [vmem:[%s252 + $0x1] sm:$0xff]
        %v264 = vld [vmem:[%s252 + $0x9] sm:$0xff]
        %s265 = scalar_lea.vmem [#allocation3], 64
        %v266 = vld [vmem:[%s265] sm:$0xff]
        %v267 = vld [vmem:[%s265 + $0x8] sm:$0xff]
        %v268 = vld [vmem:[%s265 + $0x10] sm:$0xff]
        %v269 = vld [vmem:[%s265 + $0x18] sm:$0xff]
        %v270 = vld [vmem:[%s265 + $0x20] sm:$0xff]
        %v271 = vld [vmem:[%s265 + $0x28] sm:$0xff]
        %v272 = vld [vmem:[%s265 + $0x30] sm:$0xff]
        %v273 = vld [vmem:[%s265 + $0x38] sm:$0xff]
        %vm274 = vcmask 523264
        %v276 = vsel %vm274, %v263, 0
        %v279 = vsel %vm274, %v264, 0
        %281 = vmatprep.subr.mxu0 0.0
        %282 = vmatpush1.msra.mxu0 %v266
        %283 = vmatprep.subr.mxu0 0.0
        %284 = vmatpush1.msra.mxu0 %v267
        %285 = vmatprep.subr.mxu0 0.0
        %286 = vmatpush1.msra.mxu0 %v268
        %287 = vmatprep.subr.mxu0 0.0
        %288 = vmatpush1.msra.mxu0 %v269
        %289 = vmatprep.subr.mxu0 0.0
        %290 = vmatpush1.msra.mxu0 %v270
        %291 = vmatprep.subr.mxu0 0.0
        %292 = vmatpush1.msra.mxu0 %v271
        %293 = vmatprep.subr.mxu0 0.0
        %294 = vmatpush1.msra.mxu0 %v272
        %295 = vmatprep.subr.mxu0 0.0
        %296 = vmatpush1.msra.mxu0 %v273
        %297 = vmatprep.subr.mxu0 0.0
        %298 = vmatpush1.msra.mxu0 0.0
        %299 = vmatprep.subr.mxu0 0.0
        %300 = vmatpush1.msra.mxu0 0.0
        %301 = vmatprep.subr.mxu0 0.0
        %302 = vmatpush1.msra.mxu0 0.0
        %303 = vmatprep.subr.mxu0 0.0
        %304 = vmatpush1.msra.mxu0 0.0
        %305 = vmatprep.subr.mxu0 0.0
        %306 = vmatpush1.msra.mxu0 0.0
        %307 = vmatprep.subr.mxu0 0.0
        %308 = vmatpush1.msra.mxu0 0.0
        %309 = vmatprep.subr.mxu0 0.0
        %310 = vmatpush1.msra.mxu0 0.0
        %311 = vmatprep.subr.mxu0 0.0
        %312 = vmatpush1.msra.mxu0 0.0
        %313 = vmatprep.subr.mxu0 0.0
        %314 = vmatpush1.msra.mxu0 0.0
        %315 = vmatprep.subr.mxu0 0.0
        %316 = vmatpush1.msra.mxu0 0.0
        %317 = vmatprep.subr.mxu0 0.0
        %318 = vmatpush1.msra.mxu0 0.0
        %319 = vmatprep.subr.mxu0 0.0
        %320 = vmatpush1.msra.mxu0 0.0
        %321 = vmatprep.subr.mxu0 0.0
        %322 = vmatpush1.msra.mxu0 0.0
        %323 = vmatprep.subr.mxu0 0.0
        %324 = vmatpush1.msra.mxu0 0.0
        %325 = vmatprep.subr.mxu0 0.0
        %326 = vmatpush1.msra.mxu0 0.0
        %327 = vmatprep.subr.mxu0 0.0
        %328 = vmatpush1.msra.mxu0 0.0
        %329 = vmatprep.subr.mxu0 0.0
        %330 = vmatpush1.msra.mxu0 0.0
        %331 = vmatprep.subr.mxu0 0.0
        %332 = vmatpush1.msra.mxu0 0.0
        %333 = vmatprep.subr.mxu0 0.0
        %334 = vmatpush1.msra.mxu0 0.0
        %335 = vmatprep.subr.mxu0 0.0
        %336 = vmatpush1.msra.mxu0 0.0
        %337 = vmatprep.subr.mxu0 0.0
        %338 = vmatpush1.msra.mxu0 0.0
        %339 = vmatprep.subr.mxu0 0.0
        %340 = vmatpush1.msra.mxu0 0.0
        %341 = vmatprep.subr.mxu0 0.0
        %342 = vmatpush1.msra.mxu0 0.0
        %343 = vmatprep.subr.mxu0 0.0
        %344 = vmatpush1.msra.mxu0 0.0
        %345 = vmatprep.mubr.f32.mxu0 0.0
        %346 = vmatmul.mubr.f32.gmra.mrb[0].mxu0 %v276
        %v347 = vpop.f32.mrb[0].mxu0
        %v348 = vadd.f32 0.0, %v347
        %v349 = vpop.f32.mrb[0].mxu0
        %350 = vmatprep.mubr.f32.mxu0 0.0
        %351 = vmatmul.mubr.f32.gmra.mrb[0].mxu0 %v279
        %v352 = vpop.f32.mrb[0].mxu0
        %v353 = vadd.f32 0.0, %v352
        %v354 = vpop.f32.mrb[0].mxu0
        %355 = vdwg.mxu0
        %v357 = vsel %vm274, %v253, 0
        %v360 = vsel %vm274, %v254, 0
        %362 = vmatprep.subr.mxu0 0.0
        %363 = vmatpush1.msra.mxu0 %v255
        %364 = vmatprep.subr.mxu0 0.0
        %365 = vmatpush1.msra.mxu0 %v256
        %366 = vmatprep.subr.mxu0 0.0
        %367 = vmatpush1.msra.mxu0 %v257
        %368 = vmatprep.subr.mxu0 0.0
        %369 = vmatpush1.msra.mxu0 %v258
        %370 = vmatprep.subr.mxu0 0.0
        %371 = vmatpush1.msra.mxu0 %v259
        %372 = vmatprep.subr.mxu0 0.0
        %373 = vmatpush1.msra.mxu0 %v260
        %374 = vmatprep.subr.mxu0 0.0
        %375 = vmatpush1.msra.mxu0 %v261
        %376 = vmatprep.subr.mxu0 0.0
        %377 = vmatpush1.msra.mxu0 %v262
        %378 = vmatprep.subr.mxu0 0.0
        %379 = vmatpush1.msra.mxu0 0.0
        %380 = vmatprep.subr.mxu0 0.0
        %381 = vmatpush1.msra.mxu0 0.0
        %382 = vmatprep.subr.mxu0 0.0
        %383 = vmatpush1.msra.mxu0 0.0
        %384 = vmatprep.subr.mxu0 0.0
        %385 = vmatpush1.msra.mxu0 0.0
        %386 = vmatprep.subr.mxu0 0.0
        %387 = vmatpush1.msra.mxu0 0.0
        %388 = vmatprep.subr.mxu0 0.0
        %389 = vmatpush1.msra.mxu0 0.0
        %390 = vmatprep.subr.mxu0 0.0
        %391 = vmatpush1.msra.mxu0 0.0
        %392 = vmatprep.subr.mxu0 0.0
        %393 = vmatpush1.msra.mxu0 0.0
        %394 = vmatprep.subr.mxu0 0.0
        %395 = vmatpush1.msra.mxu0 0.0
        %396 = vmatprep.subr.mxu0 0.0
        %397 = vmatpush1.msra.mxu0 0.0
        %398 = vmatprep.subr.mxu0 0.0
        %399 = vmatpush1.msra.mxu0 0.0
        %400 = vmatprep.subr.mxu0 0.0
        %401 = vmatpush1.msra.mxu0 0.0
        %402 = vmatprep.subr.mxu0 0.0
        %403 = vmatpush1.msra.mxu0 0.0
        %404 = vmatprep.subr.mxu0 0.0
        %405 = vmatpush1.msra.mxu0 0.0
        %406 = vmatprep.subr.mxu0 0.0
        %407 = vmatpush1.msra.mxu0 0.0
        %408 = vmatprep.subr.mxu0 0.0
        %409 = vmatpush1.msra.mxu0 0.0
        %410 = vmatprep.subr.mxu0 0.0
        %411 = vmatpush1.msra.mxu0 0.0
        %412 = vmatprep.subr.mxu0 0.0
        %413 = vmatpush1.msra.mxu0 0.0
        %414 = vmatprep.subr.mxu0 0.0
        %415 = vmatpush1.msra.mxu0 0.0
        %416 = vmatprep.subr.mxu0 0.0
        %417 = vmatpush1.msra.mxu0 0.0
        %418 = vmatprep.subr.mxu0 0.0
        %419 = vmatpush1.msra.mxu0 0.0
        %420 = vmatprep.subr.mxu0 0.0
        %421 = vmatpush1.msra.mxu0 0.0
        %422 = vmatprep.subr.mxu0 0.0
        %423 = vmatpush1.msra.mxu0 0.0
        %424 = vmatprep.subr.mxu0 0.0
        %425 = vmatpush1.msra.mxu0 0.0
        %426 = vmatprep.mubr.f32.mxu0 0.0
        %427 = vmatmul.mubr.f32.gmra.mrb[0].mxu0 %v357
        %v428 = vpop.f32.mrb[0].mxu0
        %v429 = vadd.f32 %v348, %v428
        %v430 = vpop.f32.mrb[0].mxu0
        %431 = vmatprep.mubr.f32.mxu0 0.0
        %432 = vmatmul.mubr.f32.gmra.mrb[0].mxu0 %v360
        %v433 = vpop.f32.mrb[0].mxu0
        %v434 = vadd.f32 %v353, %v433
        %v435 = vpop.f32.mrb[0].mxu0
        %436 = vdwg.mxu0
        %v437 = vld [vmem:[%s252 + $0x2] sm:$0xff]
        %v438 = vld [vmem:[%s252 + $0xa] sm:$0xff]
        %s439 = scalar_lea.vmem [#allocation3], 128
        %v440 = vld [vmem:[%s439] sm:$0xff]
        %v441 = vld [vmem:[%s439 + $0x8] sm:$0xff]
        %v442 = vld [vmem:[%s439 + $0x10] sm:$0xff]
        %v443 = vld [vmem:[%s439 + $0x18] sm:$0xff]
        %v444 = vld [vmem:[%s439 + $0x20] sm:$0xff]
        %v445 = vld [vmem:[%s439 + $0x28] sm:$0xff]
        %v446 = vld [vmem:[%s439 + $0x30] sm:$0xff]
        %v447 = vld [vmem:[%s439 + $0x38] sm:$0xff]
        %v449 = vsel %vm274, %v437, 0
        %v452 = vsel %vm274, %v438, 0
        %454 = vmatprep.subr.mxu0 0.0
        %455 = vmatpush1.msra.mxu0 %v440
        %456 = vmatprep.subr.mxu0 0.0
        %457 = vmatpush1.msra.mxu0 %v441
        %458 = vmatprep.subr.mxu0 0.0
        %459 = vmatpush1.msra.mxu0 %v442
        %460 = vmatprep.subr.mxu0 0.0
        %461 = vmatpush1.msra.mxu0 %v443
        %462 = vmatprep.subr.mxu0 0.0
        %463 = vmatpush1.msra.mxu0 %v444
        %464 = vmatprep.subr.mxu0 0.0
        %465 = vmatpush1.msra.mxu0 %v445
        %466 = vmatprep.subr.mxu0 0.0
        %467 = vmatpush1.msra.mxu0 %v446
        %468 = vmatprep.subr.mxu0 0.0
        %469 = vmatpush1.msra.mxu0 %v447
        %470 = vmatprep.subr.mxu0 0.0
        %471 = vmatpush1.msra.mxu0 0.0
        %472 = vmatprep.subr.mxu0 0.0
        %473 = vmatpush1.msra.mxu0 0.0
        %474 = vmatprep.subr.mxu0 0.0
        %475 = vmatpush1.msra.mxu0 0.0
        %476 = vmatprep.subr.mxu0 0.0
        %477 = vmatpush1.msra.mxu0 0.0
        %478 = vmatprep.subr.mxu0 0.0
        %479 = vmatpush1.msra.mxu0 0.0
        %480 = vmatprep.subr.mxu0 0.0
        %481 = vmatpush1.msra.mxu0 0.0
        %482 = vmatprep.subr.mxu0 0.0
        %483 = vmatpush1.msra.mxu0 0.0
        %484 = vmatprep.subr.mxu0 0.0
        %485 = vmatpush1.msra.mxu0 0.0
        %486 = vmatprep.subr.mxu0 0.0
        %487 = vmatpush1.msra.mxu0 0.0
        %488 = vmatprep.subr.mxu0 0.0
        %489 = vmatpush1.msra.mxu0 0.0
        %490 = vmatprep.subr.mxu0 0.0
        %491 = vmatpush1.msra.mxu0 0.0
        %492 = vmatprep.subr.mxu0 0.0
        %493 = vmatpush1.msra.mxu0 0.0
        %494 = vmatprep.subr.mxu0 0.0
        %495 = vmatpush1.msra.mxu0 0.0
        %496 = vmatprep.subr.mxu0 0.0
        %497 = vmatpush1.msra.mxu0 0.0
        %498 = vmatprep.subr.mxu0 0.0
        %499 = vmatpush1.msra.mxu0 0.0
        %500 = vmatprep.subr.mxu0 0.0
        %501 = vmatpush1.msra.mxu0 0.0
        %502 = vmatprep.subr.mxu0 0.0
        %503 = vmatpush1.msra.mxu0 0.0
        %504 = vmatprep.subr.mxu0 0.0
        %505 = vmatpush1.msra.mxu0 0.0
        %506 = vmatprep.subr.mxu0 0.0
        %507 = vmatpush1.msra.mxu0 0.0
        %508 = vmatprep.subr.mxu0 0.0
        %509 = vmatpush1.msra.mxu0 0.0
        %510 = vmatprep.subr.mxu0 0.0
        %511 = vmatpush1.msra.mxu0 0.0
        %512 = vmatprep.subr.mxu0 0.0
        %513 = vmatpush1.msra.mxu0 0.0
        %514 = vmatprep.subr.mxu0 0.0
        %515 = vmatpush1.msra.mxu0 0.0
        %516 = vmatprep.subr.mxu0 0.0
        %517 = vmatpush1.msra.mxu0 0.0
        %518 = vmatprep.mubr.f32.mxu0 0.0
        %519 = vmatmul.mubr.f32.gmra.mrb[0].mxu0 %v449
        %v520 = vpop.f32.mrb[0].mxu0
        %v521 = vadd.f32 0.0, %v520
        %v522 = vpop.f32.mrb[0].mxu0
        %523 = vmatprep.mubr.f32.mxu0 0.0
        %524 = vmatmul.mubr.f32.gmra.mrb[0].mxu0 %v452
        %v525 = vpop.f32.mrb[0].mxu0
        %v526 = vadd.f32 0.0, %v525
        %v527 = vpop.f32.mrb[0].mxu0
        %528 = vdwg.mxu0
        %v529 = vadd.f32 %v429, %v521
        %v530 = vadd.f32 %v434, %v526
        %v531 = vld [vmem:[%s2] sm:$0x1]
        %v533 = vlaneseq
        %v534 = vshrl.u32 %v533, 7
        %v535 = vsub.s32 0, %v534
        %v536 = vrot.slane %v531, %v535
        %v538 = vadd.f32 %v529, %v536
        %v539 = vadd.f32 %v530, %v536
        %v540 = vmax.f32 %v538, 0.0
        %v541 = vmax.f32 %v539, 0.0
        %vm542 = vcmask 516096
        %543 = vst.msk [vmem:[#allocation2] sm:$0x1] %vm542, 0.0
        %544 = vst.msk [vmem:[#allocation2 + $0x11] sm:$0x1] %vm542, 0.0
        %545 = vst.msk [vmem:[#allocation2 + $0x1] sm:$0xff] %vm274, %v540
        %546 = vst.msk [vmem:[#allocation2 + $0x9] sm:$0xff] %vm274, %v541
        %v547 = vld [vmem:[#allocation2] sm:$0xff]
        %v548 = vld [vmem:[#allocation2 + $0x8] sm:$0xff]
        %v549 = vld [vmem:[#allocation6] sm:$0xff]
        %v550 = vld [vmem:[#allocation6 + $0x8] sm:$0xff]
        %v551 = vld [vmem:[#allocation6 + $0x10] sm:$0xff]
        %v552 = vld [vmem:[#allocation6 + $0x18] sm:$0xff]
        %v553 = vld [vmem:[#allocation6 + $0x20] sm:$0xff]
        %v554 = vld [vmem:[#allocation6 + $0x28] sm:$0xff]
        %v555 = vld [vmem:[#allocation6 + $0x30] sm:$0xff]
        %v556 = vld [vmem:[#allocation6 + $0x38] sm:$0xff]
        %v557 = vld [vmem:[#allocation2 + $0x1] sm:$0xff]
        %v558 = vld [vmem:[#allocation2 + $0x9] sm:$0xff]
        %s559 = scalar_lea.vmem [#allocation6], 64
        %v560 = vld [vmem:[%s559] sm:$0xff]
        %v561 = vld [vmem:[%s559 + $0x8] sm:$0xff]
        %v562 = vld [vmem:[%s559 + $0x10] sm:$0xff]
        %v563 = vld [vmem:[%s559 + $0x18] sm:$0xff]
        %v564 = vld [vmem:[%s559 + $0x20] sm:$0xff]
        %v565 = vld [vmem:[%s559 + $0x28] sm:$0xff]
        %v566 = vld [vmem:[%s559 + $0x30] sm:$0xff]
        %v567 = vld [vmem:[%s559 + $0x38] sm:$0xff]
        %v569 = vsel %vm274, %v557, 0
        %v572 = vsel %vm274, %v558, 0
        %574 = vmatprep.subr.mxu0 0.0
        %575 = vmatpush1.msra.mxu0 %v560
        %576 = vmatprep.subr.mxu0 0.0
        %577 = vmatpush1.msra.mxu0 %v561
        %578 = vmatprep.subr.mxu0 0.0
        %579 = vmatpush1.msra.mxu0 %v562
        %580 = vmatprep.subr.mxu0 0.0
        %581 = vmatpush1.msra.mxu0 %v563
        %582 = vmatprep.subr.mxu0 0.0
        %583 = vmatpush1.msra.mxu0 %v564
        %584 = vmatprep.subr.mxu0 0.0
        %585 = vmatpush1.msra.mxu0 %v565
        %586 = vmatprep.subr.mxu0 0.0
        %587 = vmatpush1.msra.mxu0 %v566
        %588 = vmatprep.subr.mxu0 0.0
        %589 = vmatpush1.msra.mxu0 %v567
        %590 = vmatprep.subr.mxu0 0.0
        %591 = vmatpush1.msra.mxu0 0.0
        %592 = vmatprep.subr.mxu0 0.0
        %593 = vmatpush1.msra.mxu0 0.0
        %594 = vmatprep.subr.mxu0 0.0
        %595 = vmatpush1.msra.mxu0 0.0
        %596 = vmatprep.subr.mxu0 0.0
        %597 = vmatpush1.msra.mxu0 0.0
        %598 = vmatprep.subr.mxu0 0.0
        %599 = vmatpush1.msra.mxu0 0.0
        %600 = vmatprep.subr.mxu0 0.0
        %601 = vmatpush1.msra.mxu0 0.0
        %602 = vmatprep.subr.mxu0 0.0
        %603 = vmatpush1.msra.mxu0 0.0
        %604 = vmatprep.subr.mxu0 0.0
        %605 = vmatpush1.msra.mxu0 0.0
        %606 = vmatprep.subr.mxu0 0.0
        %607 = vmatpush1.msra.mxu0 0.0
        %608 = vmatprep.subr.mxu0 0.0
        %609 = vmatpush1.msra.mxu0 0.0
        %610 = vmatprep.subr.mxu0 0.0
        %611 = vmatpush1.msra.mxu0 0.0
        %612 = vmatprep.subr.mxu0 0.0
        %613 = vmatpush1.msra.mxu0 0.0
        %614 = vmatprep.subr.mxu0 0.0
        %615 = vmatpush1.msra.mxu0 0.0
        %616 = vmatprep.subr.mxu0 0.0
        %617 = vmatpush1.msra.mxu0 0.0
        %618 = vmatprep.subr.mxu0 0.0
        %619 = vmatpush1.msra.mxu0 0.0
        %620 = vmatprep.subr.mxu0 0.0
        %621 = vmatpush1.msra.mxu0 0.0
        %622 = vmatprep.subr.mxu0 0.0
        %623 = vmatpush1.msra.mxu0 0.0
        %624 = vmatprep.subr.mxu0 0.0
        %625 = vmatpush1.msra.mxu0 0.0
        %626 = vmatprep.subr.mxu0 0.0
        %627 = vmatpush1.msra.mxu0 0.0
        %628 = vmatprep.subr.mxu0 0.0
        %629 = vmatpush1.msra.mxu0 0.0
        %630 = vmatprep.subr.mxu0 0.0
        %631 = vmatpush1.msra.mxu0 0.0
        %632 = vmatprep.subr.mxu0 0.0
        %633 = vmatpush1.msra.mxu0 0.0
        %634 = vmatprep.subr.mxu0 0.0
        %635 = vmatpush1.msra.mxu0 0.0
        %636 = vmatprep.subr.mxu0 0.0
        %637 = vmatpush1.msra.mxu0 0.0
        %638 = vmatprep.mubr.f32.mxu0 0.0
        %639 = vmatmul.mubr.f32.gmra.mrb[0].mxu0 %v569
        %v640 = vpop.f32.mrb[0].mxu0
        %v641 = vadd.f32 0.0, %v640
        %v642 = vpop.f32.mrb[0].mxu0
        %643 = vmatprep.mubr.f32.mxu0 0.0
        %644 = vmatmul.mubr.f32.gmra.mrb[0].mxu0 %v572
        %v645 = vpop.f32.mrb[0].mxu0
        %v646 = vadd.f32 0.0, %v645
        %v647 = vpop.f32.mrb[0].mxu0
        %648 = vdwg.mxu0
        %v650 = vsel %vm274, %v547, 0
        %v653 = vsel %vm274, %v548, 0
        %655 = vmatprep.subr.mxu0 0.0
        %656 = vmatpush1.msra.mxu0 %v549
        %657 = vmatprep.subr.mxu0 0.0
        %658 = vmatpush1.msra.mxu0 %v550
        %659 = vmatprep.subr.mxu0 0.0
        %660 = vmatpush1.msra.mxu0 %v551
        %661 = vmatprep.subr.mxu0 0.0
        %662 = vmatpush1.msra.mxu0 %v552
        %663 = vmatprep.subr.mxu0 0.0
        %664 = vmatpush1.msra.mxu0 %v553
        %665 = vmatprep.subr.mxu0 0.0
        %666 = vmatpush1.msra.mxu0 %v554
        %667 = vmatprep.subr.mxu0 0.0
        %668 = vmatpush1.msra.mxu0 %v555
        %669 = vmatprep.subr.mxu0 0.0
        %670 = vmatpush1.msra.mxu0 %v556
        %671 = vmatprep.subr.mxu0 0.0
        %672 = vmatpush1.msra.mxu0 0.0
        %673 = vmatprep.subr.mxu0 0.0
        %674 = vmatpush1.msra.mxu0 0.0
        %675 = vmatprep.subr.mxu0 0.0
        %676 = vmatpush1.msra.mxu0 0.0
        %677 = vmatprep.subr.mxu0 0.0
        %678 = vmatpush1.msra.mxu0 0.0
        %679 = vmatprep.subr.mxu0 0.0
        %680 = vmatpush1.msra.mxu0 0.0
        %681 = vmatprep.subr.mxu0 0.0
        %682 = vmatpush1.msra.mxu0 0.0
        %683 = vmatprep.subr.mxu0 0.0
        %684 = vmatpush1.msra.mxu0 0.0
        %685 = vmatprep.subr.mxu0 0.0
        %686 = vmatpush1.msra.mxu0 0.0
        %687 = vmatprep.subr.mxu0 0.0
        %688 = vmatpush1.msra.mxu0 0.0
        %689 = vmatprep.subr.mxu0 0.0
        %690 = vmatpush1.msra.mxu0 0.0
        %691 = vmatprep.subr.mxu0 0.0
        %692 = vmatpush1.msra.mxu0 0.0
        %693 = vmatprep.subr.mxu0 0.0
        %694 = vmatpush1.msra.mxu0 0.0
        %695 = vmatprep.subr.mxu0 0.0
        %696 = vmatpush1.msra.mxu0 0.0
        %697 = vmatprep.subr.mxu0 0.0
        %698 = vmatpush1.msra.mxu0 0.0
        %699 = vmatprep.subr.mxu0 0.0
        %700 = vmatpush1.msra.mxu0 0.0
        %701 = vmatprep.subr.mxu0 0.0
        %702 = vmatpush1.msra.mxu0 0.0
        %703 = vmatprep.subr.mxu0 0.0
        %704 = vmatpush1.msra.mxu0 0.0
        %705 = vmatprep.subr.mxu0 0.0
        %706 = vmatpush1.msra.mxu0 0.0
        %707 = vmatprep.subr.mxu0 0.0
        %708 = vmatpush1.msra.mxu0 0.0
        %709 = vmatprep.subr.mxu0 0.0
        %710 = vmatpush1.msra.mxu0 0.0
        %711 = vmatprep.subr.mxu0 0.0
        %712 = vmatpush1.msra.mxu0 0.0
        %713 = vmatprep.subr.mxu0 0.0
        %714 = vmatpush1.msra.mxu0 0.0
        %715 = vmatprep.subr.mxu0 0.0
        %716 = vmatpush1.msra.mxu0 0.0
        %717 = vmatprep.subr.mxu0 0.0
        %718 = vmatpush1.msra.mxu0 0.0
        %719 = vmatprep.mubr.f32.mxu0 0.0
        %720 = vmatmul.mubr.f32.gmra.mrb[0].mxu0 %v650
        %v721 = vpop.f32.mrb[0].mxu0
        %v722 = vadd.f32 %v641, %v721
        %v723 = vpop.f32.mrb[0].mxu0
        %724 = vmatprep.mubr.f32.mxu0 0.0
        %725 = vmatmul.mubr.f32.gmra.mrb[0].mxu0 %v653
        %v726 = vpop.f32.mrb[0].mxu0
        %v727 = vadd.f32 %v646, %v726
        %v728 = vpop.f32.mrb[0].mxu0
        %729 = vdwg.mxu0
        %v730 = vld [vmem:[#allocation2 + $0x2] sm:$0xff]
        %v731 = vld [vmem:[#allocation2 + $0xa] sm:$0xff]
        %s732 = scalar_lea.vmem [#allocation6], 128
        %v733 = vld [vmem:[%s732] sm:$0xff]
        %v734 = vld [vmem:[%s732 + $0x8] sm:$0xff]
        %v735 = vld [vmem:[%s732 + $0x10] sm:$0xff]
        %v736 = vld [vmem:[%s732 + $0x18] sm:$0xff]
        %v737 = vld [vmem:[%s732 + $0x20] sm:$0xff]
        %v738 = vld [vmem:[%s732 + $0x28] sm:$0xff]
        %v739 = vld [vmem:[%s732 + $0x30] sm:$0xff]
        %v740 = vld [vmem:[%s732 + $0x38] sm:$0xff]
        %v742 = vsel %vm274, %v730, 0
        %v745 = vsel %vm274, %v731, 0
        %747 = vmatprep.subr.mxu0 0.0
        %748 = vmatpush1.msra.mxu0 %v733
        %749 = vmatprep.subr.mxu0 0.0
        %750 = vmatpush1.msra.mxu0 %v734
        %751 = vmatprep.subr.mxu0 0.0
        %752 = vmatpush1.msra.mxu0 %v735
        %753 = vmatprep.subr.mxu0 0.0
        %754 = vmatpush1.msra.mxu0 %v736
        %755 = vmatprep.subr.mxu0 0.0
        %756 = vmatpush1.msra.mxu0 %v737
        %757 = vmatprep.subr.mxu0 0.0
        %758 = vmatpush1.msra.mxu0 %v738
        %759 = vmatprep.subr.mxu0 0.0
        %760 = vmatpush1.msra.mxu0 %v739
        %761 = vmatprep.subr.mxu0 0.0
        %762 = vmatpush1.msra.mxu0 %v740
        %763 = vmatprep.subr.mxu0 0.0
        %764 = vmatpush1.msra.mxu0 0.0
        %765 = vmatprep.subr.mxu0 0.0
        %766 = vmatpush1.msra.mxu0 0.0
        %767 = vmatprep.subr.mxu0 0.0
        %768 = vmatpush1.msra.mxu0 0.0
        %769 = vmatprep.subr.mxu0 0.0
        %770 = vmatpush1.msra.mxu0 0.0
        %771 = vmatprep.subr.mxu0 0.0
        %772 = vmatpush1.msra.mxu0 0.0
        %773 = vmatprep.subr.mxu0 0.0
        %774 = vmatpush1.msra.mxu0 0.0
        %775 = vmatprep.subr.mxu0 0.0
        %776 = vmatpush1.msra.mxu0 0.0
        %777 = vmatprep.subr.mxu0 0.0
        %778 = vmatpush1.msra.mxu0 0.0
        %779 = vmatprep.subr.mxu0 0.0
        %780 = vmatpush1.msra.mxu0 0.0
        %781 = vmatprep.subr.mxu0 0.0
        %782 = vmatpush1.msra.mxu0 0.0
        %783 = vmatprep.subr.mxu0 0.0
        %784 = vmatpush1.msra.mxu0 0.0
        %785 = vmatprep.subr.mxu0 0.0
        %786 = vmatpush1.msra.mxu0 0.0
        %787 = vmatprep.subr.mxu0 0.0
        %788 = vmatpush1.msra.mxu0 0.0
        %789 = vmatprep.subr.mxu0 0.0
        %790 = vmatpush1.msra.mxu0 0.0
        %791 = vmatprep.subr.mxu0 0.0
        %792 = vmatpush1.msra.mxu0 0.0
        %793 = vmatprep.subr.mxu0 0.0
        %794 = vmatpush1.msra.mxu0 0.0
        %795 = vmatprep.subr.mxu0 0.0
        %796 = vmatpush1.msra.mxu0 0.0
        %797 = vmatprep.subr.mxu0 0.0
        %798 = vmatpush1.msra.mxu0 0.0
        %799 = vmatprep.subr.mxu0 0.0
        %800 = vmatpush1.msra.mxu0 0.0
        %801 = vmatprep.subr.mxu0 0.0
        %802 = vmatpush1.msra.mxu0 0.0
        %803 = vmatprep.subr.mxu0 0.0
        %804 = vmatpush1.msra.mxu0 0.0
        %805 = vmatprep.subr.mxu0 0.0
        %806 = vmatpush1.msra.mxu0 0.0
        %807 = vmatprep.subr.mxu0 0.0
        %808 = vmatpush1.msra.mxu0 0.0
        %809 = vmatprep.subr.mxu0 0.0
        %810 = vmatpush1.msra.mxu0 0.0
        %811 = vmatprep.mubr.f32.mxu0 0.0
        %812 = vmatmul.mubr.f32.gmra.mrb[0].mxu0 %v742
        %v813 = vpop.f32.mrb[0].mxu0
        %v814 = vadd.f32 0.0, %v813
        %v815 = vpop.f32.mrb[0].mxu0
        %816 = vmatprep.mubr.f32.mxu0 0.0
        %817 = vmatmul.mubr.f32.gmra.mrb[0].mxu0 %v745
        %v818 = vpop.f32.mrb[0].mxu0
        %v819 = vadd.f32 0.0, %v818
        %v820 = vpop.f32.mrb[0].mxu0
        %821 = vdwg.mxu0
        %v822 = vadd.f32 %v722, %v814
        %v823 = vadd.f32 %v727, %v819
        %v824 = vld [vmem:[%s4] sm:$0x1]
        %v826 = vlaneseq
        %v827 = vshrl.u32 %v826, 7
        %v828 = vsub.s32 0, %v827
        %v829 = vrot.slane %v824, %v828
        %v831 = vadd.f32 %v822, %v829
        %v832 = vadd.f32 %v823, %v829
        %v833 = vld [vmem:[%s252 + $0x1] sm:$0xff]
        %v834 = vld [vmem:[%s252 + $0x9] sm:$0xff]
        %v835 = vadd.f32 %v831, %v833
        %v836 = vadd.f32 %v832, %v834
        %837 = vst.msk [vmem:[%s247] sm:$0xff] %vm274, %v835
        %838 = vst.msk [vmem:[%s247 + $0x8] sm:$0xff] %vm274, %v836
        %s839 = sand.u32 %s139, 1
        %s840 = scalar_lea.sflag [#allocation5], %s839
        %s841 = sand.u32 %s139, 1
        %s842 = smul.addr %s841, 16
        %s843 = scalar_lea.vmem [#allocation8], %s842
        // Predicated region
        $region49: #{tpu_custom_call.1} parent=39 // pred_check
          %p844 = pneg %p149
        $region50: #{tpu_custom_call.1} parent=39 // pred_check_branch
          %846 = sbr.rel (%p844) target = $region52
        $region51: #{tpu_custom_call.1} parent=39 // pred_region
          %s848 = ssub.s32 256, 256
          %849 = vsyncadd %s840, %s848
          %s850 = smul.addr %s21, 2
          %s851 = smul.addr %s850, 128
          %s852 = scalar_lea.hbm %s5, %s851
          %s853 = sshll.u32 %s843, 4
          %s854 = int_to_ptr.vmem [resolvable:$true] %s853
          %859 = dma.vmem_to_hbm [thread:$0]  %s854, 256, %s852, %s840, 128, 128, 8
        $region52: #{tpu_custom_call.1} parent=39 // pred_fallthru
          _
      $region40: #{tpu_custom_call.1} parent=5 // pred_fallthru
        _
      %p860 = scmp.le.s32.totalorder 2, %s16
      // Predicated region
      $region53: #{tpu_custom_call.1} parent=5 // pred_check
        %p861 = pneg %p860
      $region54: #{tpu_custom_call.1} parent=5 // pred_check_branch
        %863 = sbr.rel (%p861) target = $region56
      $region55: #{tpu_custom_call.1} parent=5 // pred_region
        %s864 = ssub.s32 %s16, 2
        // Predicated region
        $region57: #{tpu_custom_call.1} parent=55 // pred_check
          %p865 = pneg %p155
        $region58: #{tpu_custom_call.1} parent=55 // pred_check_branch
          %867 = sbr.rel (%p865) target = $region60
        $region59: #{tpu_custom_call.1} parent=55 // pred_region
          %s868 = sand.u32 %s140, 1
          %s869 = scalar_lea.sflag [#allocation5], %s868
          %s870 = sand.u32 %s140, 1
          %s871 = smul.addr %s870, 16
          %s872 = scalar_lea.vmem [#allocation8], %s871
          %873 = dma.done %s869, 256
        $region60: #{tpu_custom_call.1} parent=55 // pred_fallthru
          _
      $region56: #{tpu_custom_call.1} parent=5 // pred_fallthru
        _
    $region6: #{tpu_custom_call.1} parent=1 // loop_footer
      %s20 = sadd.s32 1, %s16
    $region7: #{tpu_custom_call.1} parent=1 // loop_footer_branch
      %15 = sbr.rel target = $region3
    $region8: #{tpu_custom_call.1} parent=1 // loop_exit
      _
    %874 = vsyncpa [#allocation4], 1
    %s875 = scalar_lea.sflag [#allocation4], 1
    %876 = vsyncpa %s875, 1
    %877 = vsyncpa [#allocation7], 1
    %878 = vsyncpa [#allocation5], 1
    %s879 = scalar_lea.sflag [#allocation5], 1
    %880 = vsyncpa %s879, 1

</llo_original>
